<compile_context>
chip_gen: v7x
topology: tpu7x:2x2x1
jax: 0.10.0
libtpu: 0.0.40
codegen_flags: <defaults>
</compile_context>

<pallas_src>
import jax
import jax.numpy as jnp
from jax import lax
from jax.experimental import pallas as pl
from jax.experimental.pallas import tpu as pltpu

LN_EPS = 1e-5  # PyTorch nn.LayerNorm default


def _round_up(a, b):
    return ((a + b - 1) // b) * b


def _vmem_capacity_bytes():
    # Defensive only around the hardware query (never masks kernel errors).
    try:
        return int(pltpu.get_tpu_info().vmem_capacity_bytes)
    except Exception:
        return 64 * 1024 * 1024  # conservative: v7x per-TensorCore VMEM


def _choose_tn(D, Dp, budget):
    """Largest W column-panel width (multiple of 128, divides Dp) whose
    double-buffered bf16 panel stays under ~1/3 of the VMEM budget."""
    for g in range(1, Dp // 128 + 1):
        if Dp % g != 0:
            continue
        tn = Dp // g
        if tn % 128 != 0:
            continue
        if 2 * D * tn * 2 <= budget // 3:
            return tn
    return 128


def _choose_tiles(M, D, Dp, io_bytes, vmem_cap):
    budget = int(vmem_cap * 0.55)          # headroom for Mosaic internal scratch
    tn = _choose_tn(D, Dp, budget)

    fixed = 2 * D * tn * 2                 # double-buffered bf16 W panel
    fixed += 2 * (2 * D * 4 + tn * 4)      # gamma, beta, bias (double-buffered)

    per_row = 2 * D * io_bytes             # double-buffered x tile
    per_row += 2 * tn * io_bytes           # double-buffered out tile
    per_row += D * 2                       # bf16 normalized-y scratch
    per_row += 4 * D * 4 + 2 * tn * 4      # in-kernel f32 temporaries

    tm = (budget - fixed) // max(per_row, 1)
    tm = int(max(8, min(512, tm)))
    # Keep >= 2 row tiles so the 'parallel' axis spans both v7x TensorCores.
    tm = min(tm, max(8, _round_up(pl.cdiv(M, 2), 8)))
    return max(8, (tm // 8) * 8), tn


def _make_kernel(inv_d):
    def kernel(x_ref, gamma_ref, beta_ref, w_ref, b_ref, o_ref, y_ref):
        # y_ref: (tm, D) bf16 scratch holding LayerNorm(x)*gamma+beta for the
        # current row tile; computed once (j == 0) and reused for every W panel.
        @pl.when(pl.program_id(1) == 0)
        def _():
            x = x_ref[...].astype(jnp.float32)
            mean = jnp.sum(x, axis=-1, keepdims=True) * inv_d
            var = jnp.sum(x * x, axis=-1, keepdims=True) * inv_d - mean * mean
            var = jnp.maximum(var, 0.0)          # guard single-pass cancellation
            xn = (x - mean) * lax.rsqrt(var + LN_EPS)
            y_ref[...] = (xn * gamma_ref[...] + beta_ref[...]).astype(jnp.bfloat16)

        # fn = Linear: bf16 x bf16 on the MXU, f32 accumulation, lane-dense store.
        out = jnp.dot(y_ref[...], w_ref[...], preferred_element_type=jnp.float32)
        o_ref[...] = (out + b_ref[...]).astype(o_ref.dtype)

    return kernel


def prenorm_linear(x, gamma, beta, w, b, *, tm=None, tn=None):
    """PreNorm with fn = Linear:  (LayerNorm(x) over last dim) @ w + b.

    x: (B, N, D);  gamma/beta/b: (D,);  w: (D, D) with (in, out) layout
    (transpose a PyTorch nn.Linear.weight before passing).
    """
    B, N, D = x.shape
    M = B * N
    Dp = _round_up(D, 128)                       # lane-dense output width
    io_bytes = jnp.dtype(x.dtype).itemsize
    vmem_cap = _vmem_capacity_bytes()
    auto_tm, auto_tn = _choose_tiles(M, D, Dp, io_bytes, vmem_cap)
    tm = auto_tm if tm is None else tm
    tn = auto_tn if tn is None else tn

    x2 = x.reshape(M, D)                         # free reshape, no HBM copy
    gamma2 = gamma.astype(jnp.float32).reshape(1, D)
    beta2 = beta.astype(jnp.float32).reshape(1, D)
    w2 = w.astype(jnp.bfloat16)                  # cast ONCE in the wrapper
    b2 = b.astype(jnp.float32)
    if Dp != D:                                  # pad weights only (tiny, one-time)
        w2 = jnp.pad(w2, ((0, 0), (0, Dp - D)))
        b2 = jnp.pad(b2, (0, Dp - D))
    b2 = b2.reshape(1, Dp)

    grid = (pl.cdiv(M, tm), Dp // tn)

    out2 = pl.pallas_call(
        _make_kernel(1.0 / float(D)),
        out_shape=jax.ShapeDtypeStruct((M, Dp), x.dtype),
        grid_spec=pltpu.PrefetchScalarGridSpec(
            num_scalar_prefetch=0,
            grid=grid,
            in_specs=[
                pl.BlockSpec((tm, D), lambda i, j: (i, 0)),   # x (unpadded read)
                pl.BlockSpec((1, D), lambda i, j: (0, 0)),    # gamma
                pl.BlockSpec((1, D), lambda i, j: (0, 0)),    # beta
                pl.BlockSpec((D, tn), lambda i, j: (0, j)),   # W panel (bf16)
                pl.BlockSpec((1, tn), lambda i, j: (0, j)),   # bias panel
            ],
            out_specs=pl.BlockSpec((tm, tn), lambda i, j: (i, j)),
            scratch_shapes=[pltpu.VMEM((tm, D), jnp.bfloat16)],
        ),
        compiler_params=pltpu.CompilerParams(
            dimension_semantics=("parallel", "arbitrary"),
            vmem_limit_bytes=int(vmem_cap * 3 // 4),
        ),
    )(x2, gamma2, beta2, w2, b2)

    out = out2 if Dp == D else out2[:, :D]       # weight-padded case only
    return out.reshape(B, N, D)


def prenorm_reference(x, gamma, beta, w, b):
    xf = x.astype(jnp.float32)
    mean = jnp.mean(xf, axis=-1, keepdims=True)
    var = jnp.mean((xf - mean) ** 2, axis=-1, keepdims=True)
    xn = (xf - mean) / jnp.sqrt(var + LN_EPS)
    y = xn * gamma + beta
    return (y @ w + b).astype(x.dtype)


if __name__ == "__main__":
    key = jax.random.PRNGKey(0)
    kx, kw, kb, kx2, kw2, kb2 = jax.random.split(key, 6)

    # Case 1: small shapes implied by the module (D=32 exercises the
    # unpadded-read / lane-dense padded-store path with a ragged feature dim).
    B, N, D = 2, 8, 32
    x = jax.random.normal(kx, (B, N, D), dtype=jnp.float32)
    gamma = jnp.ones((D,), jnp.float32)          # PyTorch LayerNorm default init
    beta = jnp.zeros((D,), jnp.float32)
    w = jax.random.normal(kw, (D, D), jnp.float32) * 0.02   # fn = Linear, (in, out)
    b = jax.random.normal(kb, (D,), jnp.float32) * 0.01

    out = jax.block_until_ready(prenorm_linear(x, gamma, beta, w, b))
    ref = prenorm_reference(x, gamma, beta, w, b)
    assert out.shape == (B, N, D)
    assert bool(jnp.all(jnp.isfinite(out)))
    # bf16 MXU operands (f32 accumulation) -> slightly looser tolerance vs f32 ref.
    assert jnp.allclose(out, ref, atol=2e-2, rtol=2e-2), "case 1 mismatch vs reference"

    # Case 2: D=256 with a forced 128-wide W panel -> exercises the column-panel
    # grid axis and the normalized-y scratch reuse across panels.
    D2 = 256
    x_b = jax.random.normal(kx2, (B, N, D2), dtype=jnp.float32)
    gamma_b = jnp.ones((D2,), jnp.float32)
    beta_b = jnp.zeros((D2,), jnp.float32)
    w_b = jax.random.normal(kw2, (D2, D2), jnp.float32) * 0.02
    b_b = jax.random.normal(kb2, (D2,), jnp.float32) * 0.01

    out_b = jax.block_until_ready(
        prenorm_linear(x_b, gamma_b, beta_b, w_b, b_b, tm=8, tn=128))
    ref_b = prenorm_reference(x_b, gamma_b, beta_b, w_b, b_b)
    assert jnp.allclose(out_b, ref_b, atol=2e-2, rtol=2e-2), "case 2 mismatch vs reference"

    print("KERNEL_OK")
</pallas_src>

<mosaic_0001>
module attributes {stable_mosaic.version = 11 : i64} {
  func.func @kernel(%arg0: i32, %arg1: i32, %arg2: memref<8x32xf32, #tpu.memory_space<vmem>>, %arg3: memref<1x32xf32, #tpu.memory_space<vmem>>, %arg4: memref<1x32xf32, #tpu.memory_space<vmem>>, %arg5: memref<32x128xbf16, #tpu.memory_space<vmem>>, %arg6: memref<1x128xf32, #tpu.memory_space<vmem>>, %arg7: memref<8x128xf32, #tpu.memory_space<vmem>>, %arg8: memref<8x32xbf16, #tpu.memory_space<vmem>>) attributes {dimension_semantics = [#tpu.dimension_semantics<parallel>, #tpu.dimension_semantics<arbitrary>], iteration_bounds = array<i64: 2, 1>, scalar_prefetch = 0 : i64, scratch_operands = 1 : i64, tpu.core_type = #tpu.core_type<tc>, window_params = [{transform_indices = @transform_0, window_bounds = array<i64: 8, 32>}, {pipeline_mode = #tpu.pipeline_mode<synchronous>, transform_indices = @transform_1, window_bounds = array<i64: 1, 32>}, {pipeline_mode = #tpu.pipeline_mode<synchronous>, transform_indices = @transform_2, window_bounds = array<i64: 1, 32>}, {transform_indices = @transform_3, window_bounds = array<i64: 32, 128>}, {transform_indices = @transform_4, window_bounds = array<i64: 1, 128>}, {transform_indices = @transform_5, window_bounds = array<i64: 8, 128>}]} {
    %c0_i32 = arith.constant 0 : i32
    %0 = arith.cmpi eq, %arg1, %c0_i32 : i32
    %1 = arith.extui %0 : i1 to i32
    %c0_i32_0 = arith.constant 0 : i32
    %2 = arith.cmpi ne, %1, %c0_i32_0 : i32
    scf.if %2 {
      %c0_8 = arith.constant 0 : index
      %c0_9 = arith.constant 0 : index
      %10 = vector.load %arg2[%c0_8, %c0_9] : memref<8x32xf32, #tpu.memory_space<vmem>>, vector<8x32xf32>
      %cst_10 = arith.constant dense<0.000000e+00> : vector<8xf32>
      %11 = vector.multi_reduction <add>, %10, %cst_10 [1] : vector<8x32xf32> to vector<8xf32>
      %12 = vector.shape_cast %11 : vector<8xf32> to vector<8x1xf32>
      %cst_11 = arith.constant 3.125000e-02 : f32
      %13 = vector.broadcast %cst_11 : f32 to vector<8x1xf32>
      %14 = arith.mulf %12, %13 : vector<8x1xf32>
      %15 = arith.mulf %10, %10 : vector<8x32xf32>
      %cst_12 = arith.constant dense<0.000000e+00> : vector<8xf32>
      %16 = vector.multi_reduction <add>, %15, %cst_12 [1] : vector<8x32xf32> to vector<8xf32>
      %17 = vector.shape_cast %16 : vector<8xf32> to vector<8x1xf32>
      %cst_13 = arith.constant 3.125000e-02 : f32
      %18 = vector.broadcast %cst_13 : f32 to vector<8x1xf32>
      %19 = arith.mulf %17, %18 : vector<8x1xf32>
      %20 = arith.mulf %14, %14 : vector<8x1xf32>
      %21 = arith.subf %19, %20 : vector<8x1xf32>
      %cst_14 = arith.constant 0.000000e+00 : f32
      %22 = vector.broadcast %cst_14 : f32 to vector<8x1xf32>
      %23 = arith.maximumf %21, %22 : vector<8x1xf32>
      %24 = vector.broadcast %14 : vector<8x1xf32> to vector<8x32xf32>
      %25 = arith.subf %10, %24 : vector<8x32xf32>
      %cst_15 = arith.constant 9.99999974E-6 : f32
      %26 = vector.broadcast %cst_15 : f32 to vector<8x1xf32>
      %27 = arith.addf %23, %26 : vector<8x1xf32>
      %28 = math.rsqrt %27 : vector<8x1xf32>
      %29 = vector.broadcast %28 : vector<8x1xf32> to vector<8x32xf32>
      %30 = arith.mulf %25, %29 : vector<8x32xf32>
      %c0_16 = arith.constant 0 : index
      %c0_17 = arith.constant 0 : index
      %31 = vector.load %arg3[%c0_16, %c0_17] : memref<1x32xf32, #tpu.memory_space<vmem>>, vector<1x32xf32>
      %32 = vector.broadcast %31 : vector<1x32xf32> to vector<8x32xf32>
      %33 = arith.mulf %30, %32 : vector<8x32xf32>
      %c0_18 = arith.constant 0 : index
      %c0_19 = arith.constant 0 : index
      %34 = vector.load %arg4[%c0_18, %c0_19] : memref<1x32xf32, #tpu.memory_space<vmem>>, vector<1x32xf32>
      %35 = vector.broadcast %34 : vector<1x32xf32> to vector<8x32xf32>
      %36 = arith.addf %33, %35 : vector<8x32xf32>
      %37 = arith.truncf %36 : vector<8x32xf32> to vector<8x32xbf16>
      %c0_20 = arith.constant 0 : index
      %c0_21 = arith.constant 0 : index
      %38 = vector.load %arg8[%c0_20, %c0_21] : memref<8x32xbf16, #tpu.memory_space<vmem>>, vector<8x32xbf16>
      tpu.vector_store %arg8[%c0_20, %c0_21], %37 {strides = array<i32>} : memref<8x32xbf16, #tpu.memory_space<vmem>>, vector<8x32xbf16>,
    } else {
    }
    %c0 = arith.constant 0 : index
    %c0_1 = arith.constant 0 : index
    %3 = vector.load %arg8[%c0, %c0_1] : memref<8x32xbf16, #tpu.memory_space<vmem>>, vector<8x32xbf16>
    %c0_2 = arith.constant 0 : index
    %c0_3 = arith.constant 0 : index
    %4 = vector.load %arg5[%c0_2, %c0_3] : memref<32x128xbf16, #tpu.memory_space<vmem>>, vector<32x128xbf16>
    %cst = arith.constant dense<0.000000e+00> : vector<8x128xf32>
    %5 = tpu.matmul %3, %4, %cst {dimension_numbers = #tpu.dot_dimension_numbers<[1], [0], [0], [1], [0, 0, 1, 1], [], []>} : vector<8x32xbf16>, vector<32x128xbf16>, vector<8x128xf32> -> vector<8x128xf32>
    %c0_4 = arith.constant 0 : index
    %c0_5 = arith.constant 0 : index
    %6 = vector.load %arg6[%c0_4, %c0_5] : memref<1x128xf32, #tpu.memory_space<vmem>>, vector<1x128xf32>
    %7 = vector.broadcast %6 : vector<1x128xf32> to vector<8x128xf32>
    %8 = arith.addf %5, %7 : vector<8x128xf32>
    %c0_6 = arith.constant 0 : index
    %c0_7 = arith.constant 0 : index
    %9 = vector.load %arg7[%c0_6, %c0_7] : memref<8x128xf32, #tpu.memory_space<vmem>>, vector<8x128xf32>
    tpu.vector_store %arg7[%c0_6, %c0_7], %8 {strides = array<i32>} : memref<8x128xf32, #tpu.memory_space<vmem>>, vector<8x128xf32>,
    return
  }
  func.func @transform_0(%arg0: i32, %arg1: i32) -> (i32, i32) {
    %c0_i32 = arith.constant 0 : i32
    %c0_i32_0 = arith.constant 0 : i32
    return %arg0, %c0_i32 : i32, i32
  }
  func.func @transform_1(%arg0: i32, %arg1: i32) -> (i32, i32) {
    %c0_i32 = arith.constant 0 : i32
    %c0_i32_0 = arith.constant 0 : i32
    %c0_i32_1 = arith.constant 0 : i32
    return %c0_i32, %c0_i32_0 : i32, i32
  }
  func.func @transform_2(%arg0: i32, %arg1: i32) -> (i32, i32) {
    %c0_i32 = arith.constant 0 : i32
    %c0_i32_0 = arith.constant 0 : i32
    %c0_i32_1 = arith.constant 0 : i32
    return %c0_i32, %c0_i32_0 : i32, i32
  }
  func.func @transform_3(%arg0: i32, %arg1: i32) -> (i32, i32) {
    %c0_i32 = arith.constant 0 : i32
    %c0_i32_0 = arith.constant 0 : i32
    return %c0_i32, %arg1 : i32, i32
  }
  func.func @transform_4(%arg0: i32, %arg1: i32) -> (i32, i32) {
    %c0_i32 = arith.constant 0 : i32
    %c0_i32_0 = arith.constant 0 : i32
    return %c0_i32, %arg1 : i32, i32
  }
  func.func @transform_5(%arg0: i32, %arg1: i32) -> (i32, i32) {
    %c0_i32 = arith.constant 0 : i32
    return %arg0, %arg1 : i32, i32
  }
}

</mosaic_0001>

<llo_original>
// kernel: tpu_custom_call.1
$region0: #{tpu_custom_call.1}
  #allocation0 [shape = 'u32[]', space=smem, size = 0x4, offset = 0x4, fixed_abs, tag = 'smem constant byte address 0x4 - core index']
  #allocation1 [shape = 'u32[144,128]{1,0:T(1,128)}', space=vmem, size = 0x12000, scoped, tag = 'internal scratch']
  #allocation2 [shape = 'bf16[8,32]{1,0:T(8,128)(2,1)}', space=vmem, size = 0x800, scoped, tag = 'scratch operand']
  %s0 = inlined_call_operand.hbm [shape: f32[16,32], index: 0, kind: input, shape index: {}]
  %s1 = inlined_call_operand.vmem [shape: f32[1,32], index: 1, kind: input, shape index: {}]
  %s2 = inlined_call_operand.vmem [shape: f32[1,32], index: 2, kind: input, shape index: {}]
  %s3 = inlined_call_operand.hbm [shape: bf16[32,128], index: 3, kind: input, shape index: {}]
  %s4 = inlined_call_operand.vmem [shape: f32[1,128], index: 4, kind: input, shape index: {}]
  %s5 = inlined_call_operand.hbm [shape: f32[16,128], index: 5, kind: output, shape index: {}]
  %s6 = sld [smem:[#allocation0]]
  $region65: #{tpu_custom_call.1} parent=0
    _
  %s8 = ssub.s32 1, %s6
  %s9 = scalar_select 0, %s8, %s6
  $region1: #{tpu_custom_call.1} parent=0
    #allocation3 [shape = 'u8[8192]{0}', space=vmem, size = 0x2000, scoped, tag = 'input window, operand 0']
    #allocation4 [shape = 's32[2]{0}', space=sflag, size = 0x8, scoped, tag = 'scoped memory for tpu_custom_call.1']
    #allocation5 [shape = 's32[2]{0}', space=sflag, size = 0x8, scoped, tag = 'scoped memory for tpu_custom_call.1']
    #allocation6 [shape = 'u8[8192]{0}', space=vmem, size = 0x2000, scoped, tag = 'input window, operand 3, single buffered']
    #allocation7 [shape = 's32[1]{0}', space=sflag, size = 0x4, scoped, tag = 'scoped memory for tpu_custom_call.1']
    #allocation8 [shape = 'u8[8192]{0}', space=vmem, size = 0x2000, scoped, tag = 'output window, operand 0']
    %10 = vsyncpa [#allocation4], 0
    %s11 = scalar_lea.sflag [#allocation4], 1
    %12 = vsyncpa %s11, 0
    %13 = vsyncpa [#allocation7], 0
    %14 = vsyncpa [#allocation5], 0
    %s15 = scalar_lea.sflag [#allocation5], 1
    %16 = vsyncpa %s15, 0
    loop: start=0, step=1, limit=4
    $region2: #{tpu_custom_call.1} parent=1 // loop_pre_header
      _
    $region3: #{tpu_custom_call.1} parent=1 // loop_header
      %s18 = sphi 0, %s22
      %p19 = scmp.ge.s32.totalorder %s18, 4
      %s25 = sphi 0, %s37
      %s26 = sphi 0, %s33
      %s27 = sphi 0, %s25
      %s28 = sphi 0, %s26
      %s29 = sphi 0, %s27
      %s30 = sphi 0, %s28
      %s40 = sphi 0, %s42
      %s43 = sphi 0, %s40
      %s44 = sphi 0, %s43
      %s60 = sphi 0, %s44
      %s64 = sphi 0, %s64
      %s66 = sphi 0, %s64
      %s67 = sphi 0, %s66
      %s81 = sphi 0, %s67
      %s85 = sphi 0, %s85
      %s87 = sphi 0, %s85
      %s88 = sphi 0, %s87
      %s102 = sphi 0, %s88
      %s108 = sphi 0, %s110
      %s111 = sphi 0, %s108
      %s112 = sphi 0, %s111
      %s128 = sphi 0, %s112
      %s134 = sphi 0, %s136
      %s137 = sphi 0, %s134
      %s138 = sphi 0, %s137
      %s154 = sphi 0, %s138
      %s162 = sphi 0, %s164
      %s165 = sphi 0, %s162
      %s166 = sphi 0, %s165
      %s182 = sphi 0, %s166
    $region4: #{tpu_custom_call.1} parent=1 // loop_header_branch
      %21 = sbr.rel (%p19) target = $region8
    $region5: #{tpu_custom_call.1} parent=1 // loop_body
      %s23 = ssub.s32 %s18, 1
      %s24 = ssub.s32 %s18, 2
      %s31 = sadd.s32 1, %s26
      %p32 = scmp.ge.s32.totalorder %s31, 1
      %s33 = scalar_select %p32, 0, %s31
      %s34 = sadd.s32 1, %s25
      %s35 = scalar_select %p32, %s34, %s25
      %p36 = scmp.ge.s32.totalorder %s35, 2
      %s37 = scalar_select %p36, 0, %s35
      %s38 = ssub.s32 %s25, %s37
      %p39 = scmp.eq.s32.totalorder %s38, 0
      %s41 = sadd.s32 %s40, 1
      %s42 = scalar_select %p39, %s40, %s41
      %p45 = pneg %p39
      %p46 = scmp.eq.s32.totalorder %s18, 1
      %p47 = por %p45, %p46
      %p48 = scmp.ne.s32.totalorder %s40, %s43
      %p49 = scmp.eq.s32.totalorder %s18, 0
      %p50 = por %p48, %p49
      %p51 = scmp.ne.s32.totalorder %s40, %s43
      %p52 = scmp.eq.s32.totalorder %s23, 1
      %p53 = por %p51, %p52
      %p54 = scmp.ne.s32.totalorder %s43, %s44
      %p55 = scmp.eq.s32.totalorder %s23, 0
      %p56 = por %p54, %p55
      %p57 = scmp.ne.s32.totalorder %s43, %s44
      %p58 = scmp.eq.s32.totalorder %s24, 1
      %p59 = por %p57, %p58
      %p61 = scmp.ne.s32.totalorder %s44, %s60
      %p62 = scmp.eq.s32.totalorder %s24, 0
      %p63 = por %p61, %p62
      %s65 = sadd.s32 %s64, 1
      %p68 = scmp.eq.s32.totalorder %s18, 1
      %p69 = scmp.ne.s32.totalorder %s64, %s66
      %p70 = scmp.eq.s32.totalorder %s18, 0
      %p71 = por %p69, %p70
      %p72 = scmp.ne.s32.totalorder %s64, %s66
      %p73 = scmp.eq.s32.totalorder %s23, 1
      %p74 = por %p72, %p73
      %p75 = scmp.ne.s32.totalorder %s66, %s67
      %p76 = scmp.eq.s32.totalorder %s23, 0
      %p77 = por %p75, %p76
      %p78 = scmp.ne.s32.totalorder %s66, %s67
      %p79 = scmp.eq.s32.totalorder %s24, 1
      %p80 = por %p78, %p79
      %p82 = scmp.ne.s32.totalorder %s67, %s81
      %p83 = scmp.eq.s32.totalorder %s24, 0
      %p84 = por %p82, %p83
      %s86 = sadd.s32 %s85, 1
      %p89 = scmp.eq.s32.totalorder %s18, 1
      %p90 = scmp.ne.s32.totalorder %s85, %s87
      %p91 = scmp.eq.s32.totalorder %s18, 0
      %p92 = por %p90, %p91
      %p93 = scmp.ne.s32.totalorder %s85, %s87
      %p94 = scmp.eq.s32.totalorder %s23, 1
      %p95 = por %p93, %p94
      %p96 = scmp.ne.s32.totalorder %s87, %s88
      %p97 = scmp.eq.s32.totalorder %s23, 0
      %p98 = por %p96, %p97
      %p99 = scmp.ne.s32.totalorder %s87, %s88
      %p100 = scmp.eq.s32.totalorder %s24, 1
      %p101 = por %p99, %p100
      %p103 = scmp.ne.s32.totalorder %s88, %s102
      %p104 = scmp.eq.s32.totalorder %s24, 0
      %p105 = por %p103, %p104
      %s106 = ssub.s32 %s26, %s33
      %p107 = scmp.eq.s32.totalorder %s106, 0
      %s109 = sadd.s32 %s108, 1
      %s110 = scalar_select %p107, %s108, %s109
      %p113 = pneg %p107
      %p114 = scmp.eq.s32.totalorder %s18, 1
      %p115 = por %p113, %p114
      %p116 = scmp.ne.s32.totalorder %s108, %s111
      %p117 = scmp.eq.s32.totalorder %s18, 0
      %p118 = por %p116, %p117
      %p119 = scmp.ne.s32.totalorder %s108, %s111
      %p120 = scmp.eq.s32.totalorder %s23, 1
      %p121 = por %p119, %p120
      %p122 = scmp.ne.s32.totalorder %s111, %s112
      %p123 = scmp.eq.s32.totalorder %s23, 0
      %p124 = por %p122, %p123
      %p125 = scmp.ne.s32.totalorder %s111, %s112
      %p126 = scmp.eq.s32.totalorder %s24, 1
      %p127 = por %p125, %p126
      %p129 = scmp.ne.s32.totalorder %s112, %s128
      %p130 = scmp.eq.s32.totalorder %s24, 0
      %p131 = por %p129, %p130
      %s132 = ssub.s32 %s26, %s33
      %p133 = scmp.eq.s32.totalorder %s132, 0
      %s135 = sadd.s32 %s134, 1
      %s136 = scalar_select %p133, %s134, %s135
      %p139 = pneg %p133
      %p140 = scmp.eq.s32.totalorder %s18, 1
      %p141 = por %p139, %p140
      %p142 = scmp.ne.s32.totalorder %s134, %s137
      %p143 = scmp.eq.s32.totalorder %s18, 0
      %p144 = por %p142, %p143
      %p145 = scmp.ne.s32.totalorder %s134, %s137
      %p146 = scmp.eq.s32.totalorder %s23, 1
      %p147 = por %p145, %p146
      %p148 = scmp.ne.s32.totalorder %s137, %s138
      %p149 = scmp.eq.s32.totalorder %s23, 0
      %p150 = por %p148, %p149
      %p151 = scmp.ne.s32.totalorder %s137, %s138
      %p152 = scmp.eq.s32.totalorder %s24, 1
      %p153 = por %p151, %p152
      %p155 = scmp.ne.s32.totalorder %s138, %s154
      %p156 = scmp.eq.s32.totalorder %s24, 0
      %p157 = por %p155, %p156
      %s158 = ssub.s32 %s25, %s37
      %s159 = ssub.s32 %s26, %s33
      %s160 = sor.u32 %s158, %s159
      %p161 = scmp.eq.s32.totalorder %s160, 0
      %s163 = sadd.s32 %s162, 1
      %s164 = scalar_select %p161, %s162, %s163
      %p167 = pneg %p161
      %p168 = scmp.eq.s32.totalorder %s18, 1
      %p169 = por %p167, %p168
      %p170 = scmp.ne.s32.totalorder %s162, %s165
      %p171 = scmp.eq.s32.totalorder %s18, 0
      %p172 = por %p170, %p171
      %p173 = scmp.ne.s32.totalorder %s162, %s165
      %p174 = scmp.eq.s32.totalorder %s23, 1
      %p175 = por %p173, %p174
      %p176 = scmp.ne.s32.totalorder %s165, %s166
      %p177 = scmp.eq.s32.totalorder %s23, 0
      %p178 = por %p176, %p177
      %p179 = scmp.ne.s32.totalorder %s165, %s166
      %p180 = scmp.eq.s32.totalorder %s24, 1
      %p181 = por %p179, %p180
      %p183 = scmp.ne.s32.totalorder %s166, %s182
      %p184 = scmp.eq.s32.totalorder %s24, 0
      %p185 = por %p183, %p184
      %p186 = scmp.le.s32.totalorder 1, %s18
      %p187 = scmp.lt.s32.totalorder %s18, 3
      %p188 = pnand %p186, %p187
      %p189 = pneg %p188
      // Predicated region
      $region9: #{tpu_custom_call.1} parent=5 // pred_check
        _
      $region10: #{tpu_custom_call.1} parent=5 // pred_check_branch
        %191 = sbr.rel (%p188) target = $region12
      $region11: #{tpu_custom_call.1} parent=5 // pred_region
        %s192 = ssub.s32 %s18, 1
        // Predicated region
        $region13: #{tpu_custom_call.1} parent=11 // pred_check
          %p193 = pneg %p77
        $region14: #{tpu_custom_call.1} parent=11 // pred_check_branch
          %195 = sbr.rel (%p193) target = $region16
        $region15: #{tpu_custom_call.1} parent=11 // pred_region
          _
        $region16: #{tpu_custom_call.1} parent=11 // pred_fallthru
          _
        // Predicated region
        $region17: #{tpu_custom_call.1} parent=11 // pred_check
          %p196 = pneg %p98
        $region18: #{tpu_custom_call.1} parent=11 // pred_check_branch
          %198 = sbr.rel (%p196) target = $region20
        $region19: #{tpu_custom_call.1} parent=11 // pred_region
          _
        $region20: #{tpu_custom_call.1} parent=11 // pred_fallthru
          _
        // Predicated region
        $region21: #{tpu_custom_call.1} parent=11 // pred_check
          %p199 = pneg %p124
        $region22: #{tpu_custom_call.1} parent=11 // pred_check_branch
          %201 = sbr.rel (%p199) target = $region24
        $region23: #{tpu_custom_call.1} parent=11 // pred_region
          %s203 = ssub.s32 256, 256
          %204 = vsyncadd [#allocation7], %s203
          %s205 = smul.addr %s28, 64
          %s206 = scalar_lea.hbm %s3, %s205
          %s207 = sshll.u32 [#allocation6], 4
          %s208 = int_to_ptr.vmem [resolvable:$true] %s207
          %213 = dma.hbm_to_vmem [thread:$0]  %s206, 256, %s208, [#allocation7], 64, 64, 4
        $region24: #{tpu_custom_call.1} parent=11 // pred_fallthru
          _
        // Predicated region
        $region25: #{tpu_custom_call.1} parent=11 // pred_check
          %p214 = pneg %p150
        $region26: #{tpu_custom_call.1} parent=11 // pred_check_branch
          %216 = sbr.rel (%p214) target = $region28
        $region27: #{tpu_custom_call.1} parent=11 // pred_region
          %p217 = scmp.lt.s32.totalorder %s28, 0
          %s218 = scalar_select %p217, %s28, 0
          %s219 = scalar_lea.vmem %s4, %s218
        $region28: #{tpu_custom_call.1} parent=11 // pred_fallthru
          _
      $region12: #{tpu_custom_call.1} parent=5 // pred_fallthru
        _
      %p220 = scmp.lt.s32.totalorder %s18, 2
      // Predicated region
      $region29: #{tpu_custom_call.1} parent=5 // pred_check
        %p221 = pneg %p220
      $region30: #{tpu_custom_call.1} parent=5 // pred_check_branch
        %223 = sbr.rel (%p221) target = $region32
      $region31: #{tpu_custom_call.1} parent=5 // pred_region
        // Predicated region
        $region33: #{tpu_custom_call.1} parent=31 // pred_check
          %p224 = pneg %p50
        $region34: #{tpu_custom_call.1} parent=31 // pred_check_branch
          %226 = sbr.rel (%p224) target = $region36
        $region35: #{tpu_custom_call.1} parent=31 // pred_region
          %s227 = sand.u32 %s40, 1
          %s228 = scalar_lea.sflag [#allocation4], %s227
          %s229 = sand.u32 %s40, 1
          %s230 = smul.addr %s229, 8
          %s231 = scalar_lea.vmem [#allocation3], %s230
          %s233 = ssub.s32 128, 128
          %234 = vsyncadd %s228, %s233
          %s235 = smul.addr %s25, 128
          %s236 = scalar_lea.hbm %s0, %s235
          %s238 = sshll.u32 %s231, 4
          %s239 = int_to_ptr.vmem [resolvable:$true] %s238
          %241 = dma.hbm_to_vmem [thread:$0]  %s236, 128, %s239, %s228
        $region36: #{tpu_custom_call.1} parent=31 // pred_fallthru
          _
      $region32: #{tpu_custom_call.1} parent=5 // pred_fallthru
        _
      %p242 = scmp.le.s32.totalorder 1, %s18
      %p243 = scmp.lt.s32.totalorder %s18, 3
      %p244 = pnand %p242, %p243
      %p245 = pneg %p244
      // Predicated region
      $region37: #{tpu_custom_call.1} parent=5 // pred_check
        _
      $region38: #{tpu_custom_call.1} parent=5 // pred_check_branch
        %247 = sbr.rel (%p244) target = $region40
      $region39: #{tpu_custom_call.1} parent=5 // pred_region
        %s248 = ssub.s32 %s18, 1
        %s249 = sand.u32 %s43, 1
        %s250 = scalar_lea.sflag [#allocation4], %s249
        %s251 = sand.u32 %s43, 1
        %s252 = smul.addr %s251, 8
        %s253 = scalar_lea.vmem [#allocation3], %s252
        // Predicated region
        $region41: #{tpu_custom_call.1} parent=39 // pred_check
          %p254 = pneg %p56
        $region42: #{tpu_custom_call.1} parent=39 // pred_check_branch
          %256 = sbr.rel (%p254) target = $region44
        $region43: #{tpu_custom_call.1} parent=39 // pred_region
          %257 = dma.done %s250, 128
        $region44: #{tpu_custom_call.1} parent=39 // pred_fallthru
          _
        // Predicated region
        $region45: #{tpu_custom_call.1} parent=39 // pred_check
          %p258 = pneg %p124
        $region46: #{tpu_custom_call.1} parent=39 // pred_check_branch
          %260 = sbr.rel (%p258) target = $region48
        $region47: #{tpu_custom_call.1} parent=39 // pred_region
          %261 = dma.done [#allocation7], 256
        $region48: #{tpu_custom_call.1} parent=39 // pred_fallthru
          _
        %s262 = sand.u32 %s43, 1
        %s263 = scalar_lea.sflag [#allocation4], %s262
        %s264 = sand.u32 %s43, 1
        %s265 = smul.addr %s264, 8
        %s266 = scalar_lea.vmem [#allocation3], %s265
        %p267 = pneg %p56
        %p268 = pneg %p53
        %p269 = pneg %p77
        %p270 = pneg %p74
        %p271 = pneg %p98
        %p272 = pneg %p95
        %p273 = pneg %p124
        %p274 = pneg %p121
        %p275 = scmp.lt.s32.totalorder %s28, 0
        %s276 = scalar_select %p275, %s28, 0
        %s277 = scalar_lea.vmem %s4, %s276
        %p278 = pneg %p150
        %p279 = pneg %p147
        %p280 = pneg %p178
        %p281 = pneg %p175
        %s282 = sand.u32 %s165, 1
        %s283 = scalar_lea.sflag [#allocation5], %s282
        %s284 = sand.u32 %s165, 1
        %s285 = smul.addr %s284, 8
        %s286 = scalar_lea.vmem [#allocation8], %s285
        %p287 = scmp.lt.s32.totalorder %s28, 0
        %s288 = scalar_select %p287, %s28, 0
        %s289 = scalar_lea.vmem %s4, %s288
        %p291 = scmp.eq.s32.totalorder %s28, 0
        // Predicated region
        $region49: #{tpu_custom_call.1} parent=39 // pred_check
          %p292 = pneg %p291
        $region50: #{tpu_custom_call.1} parent=39 // pred_check_branch
          %294 = sbr.rel (%p292) target = $region52
        $region51: #{tpu_custom_call.1} parent=39 // pred_region
          %v295 = vld [vmem:[%s253] sm:$0xff]
          %vm296 = vcmask 261120
          %v297 = vsel %vm296, %v295, 0.0
          %298 = vadd.xlane.f32.xlu0 %v297
          %v299 = vpop.xlane.xlu0 %298
          %v300 = vmul.f32 %v299, 0.03125
          %v301 = vmul.f32 %v295, %v295
          %v302 = vsel %vm296, %v301, 0.0
          %303 = vadd.xlane.f32.xlu0 %v302
          %v304 = vpop.xlane.xlu0 %303
          %v305 = vmul.f32 %v304, 0.03125
          %v306 = vmul.f32 %v300, %v300
          %v307 = vsub.f32 %v305, %v306
          %v308 = vmax.f32 %v307, 0.0
          %v309 = vsub.f32 %v295, %v300
          %v310 = vadd.f32 %v308, 1e-05
          %v311 = vrsqrt.pop %v310
          %v312 = vmul.f32 %v309, %v311
          %v313 = vld [vmem:[%s1] sm:$0x1]
          %v315 = vlaneseq
          %v316 = vshrl.u32 %v315, 7
          %v317 = vsub.s32 0, %v316
          %v318 = vrot.slane %v313, %v317
          %v320 = vmul.f32 %v312, %v318
          %v321 = vld [vmem:[%s2] sm:$0x1]
          %v323 = vlaneseq
          %v324 = vshrl.u32 %v323, 7
          %v325 = vsub.s32 0, %v324
          %v326 = vrot.slane %v321, %v325
          %v328 = vadd.f32 %v320, %v326
          %v329 = vpack.c.bf16 %v328, %v328
          %vm330 = vcmask 257024
          %331 = vst.msk [vmem:[#allocation2] sm:$0xf] %vm330, %v329
        $region52: #{tpu_custom_call.1} parent=39 // pred_fallthru
          _
        %v332 = vld [vmem:[#allocation2] sm:$0xf]
        %v333 = vld [vmem:[#allocation6] sm:$0xf]
        %v334 = vld [vmem:[#allocation6 + $0x4] sm:$0xf]
        %v335 = vld [vmem:[#allocation6 + $0x8] sm:$0xf]
        %v336 = vld [vmem:[#allocation6 + $0xc] sm:$0xf]
        %v337 = vld [vmem:[%s289] sm:$0x1]
        %v339 = vlaneseq
        %v340 = vshrl.u32 %v339, 7
        %v341 = vsub.s32 0, %v340
        %v342 = vrot.slane %v337, %v341
        %v348 = vunpack.c.l.b16 %v333
        %v349 = vunpack.c.l.b16 %v334
        %v350 = vunpack.c.l.b16 %v335
        %v351 = vunpack.c.l.b16 %v336
        %v352 = vpack.c.b16 %v349, %v348
        %v353 = vpack.c.b16 %v351, %v350
        %vm356 = vcmask 261120
        %v358 = vsel %vm356, %v332, 0
        %360 = vmatprep.subr.bf16.mxu0 0
        %361 = vmatpush1.bf16.msra.mxu0 %v352
        %362 = vmatprep.subr.bf16.mxu0 0
        %363 = vmatpush1.bf16.msra.mxu0 %v353
        %364 = vmatprep.subr.bf16.mxu0 0
        %365 = vmatpush1.bf16.msra.mxu0 0
        %366 = vmatprep.subr.bf16.mxu0 0
        %367 = vmatpush1.bf16.msra.mxu0 0
        %368 = vmatprep.subr.bf16.mxu0 0
        %369 = vmatpush1.bf16.msra.mxu0 0
        %370 = vmatprep.subr.bf16.mxu0 0
        %371 = vmatpush1.bf16.msra.mxu0 0
        %372 = vmatprep.subr.bf16.mxu0 0
        %373 = vmatpush1.bf16.msra.mxu0 0
        %374 = vmatprep.subr.bf16.mxu0 0
        %375 = vmatpush1.bf16.msra.mxu0 0
        %376 = vmatprep.subr.bf16.mxu0 0
        %377 = vmatpush1.bf16.msra.mxu0 0
        %378 = vmatprep.subr.bf16.mxu0 0
        %379 = vmatpush1.bf16.msra.mxu0 0
        %380 = vmatprep.subr.bf16.mxu0 0
        %381 = vmatpush1.bf16.msra.mxu0 0
        %382 = vmatprep.subr.bf16.mxu0 0
        %383 = vmatpush1.bf16.msra.mxu0 0
        %384 = vmatprep.subr.bf16.mxu0 0
        %385 = vmatpush1.bf16.msra.mxu0 0
        %386 = vmatprep.subr.bf16.mxu0 0
        %387 = vmatpush1.bf16.msra.mxu0 0
        %388 = vmatprep.subr.bf16.mxu0 0
        %389 = vmatpush1.bf16.msra.mxu0 0
        %390 = vmatprep.subr.bf16.mxu0 0
        %391 = vmatpush1.bf16.msra.mxu0 0
        %392 = vmatprep.mubr.bf16.mxu0 0
        %393 = vmatmul.mubr.bf16.gmra.mrb[0].mxu0 %v358
        %v394 = vpop.f32.mrb[0].mxu0
        %v395 = vadd.f32 %v342, %v394
        %v396 = vpop.f32.mrb[0].mxu0
        %v397 = vpop.f32.mrb[0].mxu0
        %v398 = vpop.f32.mrb[0].mxu0
        %399 = vdwg.mxu0
        %400 = vst [vmem:[%s286] sm:$0xff] %v395
        %s401 = sand.u32 %s165, 1
        %s402 = scalar_lea.sflag [#allocation5], %s401
        %s403 = sand.u32 %s165, 1
        %s404 = smul.addr %s403, 8
        %s405 = scalar_lea.vmem [#allocation8], %s404
        // Predicated region
        $region53: #{tpu_custom_call.1} parent=39 // pred_check
          %p406 = pneg %p175
        $region54: #{tpu_custom_call.1} parent=39 // pred_check_branch
          %408 = sbr.rel (%p406) target = $region56
        $region55: #{tpu_custom_call.1} parent=39 // pred_region
          %s410 = ssub.s32 128, 128
          %411 = vsyncadd %s402, %s410
          %s412 = sadd.s32 %s28, %s27
          %s413 = smul.addr %s412, 128
          %s414 = scalar_lea.hbm %s5, %s413
          %s416 = sshll.u32 %s405, 4
          %s417 = int_to_ptr.vmem [resolvable:$true] %s416
          %419 = dma.vmem_to_hbm [thread:$0]  %s417, 128, %s414, %s402
        $region56: #{tpu_custom_call.1} parent=39 // pred_fallthru
          _
      $region40: #{tpu_custom_call.1} parent=5 // pred_fallthru
        _
      %p420 = scmp.le.s32.totalorder 2, %s18
      // Predicated region
      $region57: #{tpu_custom_call.1} parent=5 // pred_check
        %p421 = pneg %p420
      $region58: #{tpu_custom_call.1} parent=5 // pred_check_branch
        %423 = sbr.rel (%p421) target = $region60
      $region59: #{tpu_custom_call.1} parent=5 // pred_region
        %s424 = ssub.s32 %s18, 2
        // Predicated region
        $region61: #{tpu_custom_call.1} parent=59 // pred_check
          %p425 = pneg %p181
        $region62: #{tpu_custom_call.1} parent=59 // pred_check_branch
          %427 = sbr.rel (%p425) target = $region64
        $region63: #{tpu_custom_call.1} parent=59 // pred_region
          %s428 = sand.u32 %s166, 1
          %s429 = scalar_lea.sflag [#allocation5], %s428
          %s430 = sand.u32 %s166, 1
          %s431 = smul.addr %s430, 8
          %s432 = scalar_lea.vmem [#allocation8], %s431
          %433 = dma.done %s429, 128
        $region64: #{tpu_custom_call.1} parent=59 // pred_fallthru
          _
      $region60: #{tpu_custom_call.1} parent=5 // pred_fallthru
        _
    $region6: #{tpu_custom_call.1} parent=1 // loop_footer
      %s22 = sadd.s32 1, %s18
    $region7: #{tpu_custom_call.1} parent=1 // loop_footer_branch
      %17 = sbr.rel target = $region3
    $region8: #{tpu_custom_call.1} parent=1 // loop_exit
      _
    %434 = vsyncpa [#allocation4], 1
    %s435 = scalar_lea.sflag [#allocation4], 1
    %436 = vsyncpa %s435, 1
    %437 = vsyncpa [#allocation7], 1
    %438 = vsyncpa [#allocation5], 1
    %s439 = scalar_lea.sflag [#allocation5], 1
    %440 = vsyncpa %s439, 1

</llo_original>
